<compile_context>
chip_gen: v7x
topology: tpu7x:2x2x1
jax: 0.10.0
libtpu: 0.0.40
codegen_flags: <defaults>
</compile_context>

<pallas_src>
import jax
import jax.numpy as jnp
from jax import lax
from jax.experimental import pallas as pl
from jax.experimental.pallas import tpu as pltpu

_NEG_LARGE = -1e30   # acts as -inf for f32 softmax masking of padded columns
_MIB = 1024 * 1024


def _round_up(x, m):
    return (x + m - 1) // m * m


def _vmem_capacity_bytes():
    """Physical per-TensorCore VMEM; conservative (v7x) fallback if unknown."""
    try:
        info = pltpu.get_tpu_info()
        cap = getattr(info, "vmem_capacity_bytes", None)
        if cap:
            return int(cap)
    except Exception:
        pass
    return 64 * _MIB


def _make_mlm_kernel(num_v_tiles: int, tn: int, use_mxu_rowsum: bool):
    """num_v_tiles / tn / use_mxu_rowsum are static Python values."""

    def kernel(x_ref, w_ref, b_ref, o_ref, m_ref, l_ref):
        # x_ref: (tm, Kp) bf16, w_ref: (Kp, tn) bf16, b_ref: (1, tn) f32
        # o_ref: (tm, Vp) out dtype -- VMEM-resident across the vocab axis.
        # m_ref / l_ref: (tm, 1) f32 running max / running sum-of-exp.
        j = pl.program_id(1)

        @pl.when(j == 0)
        def _init():
            m_ref[...] = jnp.full_like(m_ref, _NEG_LARGE)
            l_ref[...] = jnp.zeros_like(l_ref)

        # MXU matmul for this (row tile, vocab tile); f32 accumulation.
        logits = jnp.dot(x_ref[...], w_ref[...],
                         preferred_element_type=jnp.float32)
        logits = logits + b_ref[...].astype(jnp.float32)

        # Stage raw logits directly in the resident output block.  The column
        # offset is a multiple of 128 -> unmasked, lane-dense stores.
        col = pl.multiple_of(j * tn, 128)
        o_ref[:, pl.ds(col, tn)] = logits.astype(o_ref.dtype)

        # Online logsumexp across vocab tiles (exp/log -> EUP, max -> XLU).
        m_prev = m_ref[...]
        m_new = jnp.maximum(m_prev, jnp.max(logits, axis=-1, keepdims=True))
        p = jnp.exp(logits - m_new)
        if use_mxu_rowsum:
            # Small-hidden regime: the cross-lane reduce would saturate the
            # XLU, so do the row sum on the (otherwise slack) MXU instead.
            ones = jnp.ones((tn, 128), jnp.float32)
            s = jnp.dot(p, ones, preferred_element_type=jnp.float32)[:, 0:1]
        else:
            s = jnp.sum(p, axis=-1, keepdims=True)
        l_ref[...] = l_ref[...] * jnp.exp(m_prev - m_new) + s
        m_ref[...] = m_new

        @pl.when(j == num_v_tiles - 1)
        def _finalize():
            lse = m_ref[...] + jnp.log(l_ref[...])            # (tm, 1), f32
            if num_v_tiles <= 8:
                # Static unroll -> fully static, lane-dense 128-aligned stores.
                for v in range(num_v_tiles):
                    sl = slice(v * tn, (v + 1) * tn)
                    o_ref[:, sl] = (o_ref[:, sl].astype(jnp.float32)
                                    - lse).astype(o_ref.dtype)
            else:
                # Bounded unroll: scheduler visibility without code bloat.
                def body(v, carry):
                    c = pl.multiple_of(v * tn, 128)
                    blk = o_ref[:, pl.ds(c, tn)].astype(jnp.float32)
                    o_ref[:, pl.ds(c, tn)] = (blk - lse).astype(o_ref.dtype)
                    return carry
                lax.fori_loop(0, num_v_tiles, body, 0, unroll=4)

    return kernel


def masked_language_model(x, w_t, b, *, tm=512, tn=1024,
                          compute_dtype=jnp.bfloat16,
                          out_dtype=None,
                          vmem_budget_bytes=None):
    """log_softmax(x @ w_t + b, axis=-1).

    x: (batch, seq, hidden); w_t: (hidden, vocab) (nn.Linear weight, transposed);
    b: (vocab,).  Returns (batch, seq, vocab) in out_dtype (default x.dtype).
    Note: for bf16 out_dtype the staged raw logits take one bf16 round-trip
    (~1e-2-level extra rounding); pass out_dtype=jnp.float32 if that matters.
    """
    batch, seq, hidden = x.shape
    vocab = w_t.shape[1]
    M = batch * seq
    out_dtype = x.dtype if out_dtype is None else jnp.dtype(out_dtype)

    in_b = jnp.dtype(compute_dtype).itemsize
    out_b = jnp.dtype(out_dtype).itemsize

    # --- generation-aware VMEM budget ---------------------------------------
    vmem_cap = _vmem_capacity_bytes()
    if vmem_budget_bytes is None:
        # ~44 MiB on v7x (64 MiB physical), ~104 MiB on v5e/v6e (128 MiB).
        vmem_budget_bytes = max(32 * _MIB,
                                min(vmem_cap - 20 * _MIB, 104 * _MIB))

    # --- tile / padding geometry --------------------------------------------
    Kp = _round_up(hidden, 128)                       # padded contraction dim
    Vp0 = _round_up(vocab, 128)                       # 128-aligned vocab
    tn_req = min(_round_up(tn, 128), Vp0)
    tn = tn_req
    if Vp0 % tn_req != 0:
        # Prefer a tn (>= tn_req/2) that exactly tiles the aligned vocab, so
        # no extra vocab padding (and no trailing slice when vocab % 128 == 0).
        for cand in range(tn_req, max(128, tn_req // 2) - 1, -128):
            if Vp0 % cand == 0:
                tn = cand
                break
    Vp = _round_up(vocab, tn)
    num_v = Vp // tn

    # Row tile: multiple of 16, never larger than the (16-rounded) row count.
    # (On v7x, prefer an even number of row tiles so both TensorCores work.)
    tm = _round_up(min(tm, _round_up(M, 16)), 16)

    def vmem_estimate(tm_):
        return (2 * tm_ * Kp * in_b        # x tiles (double-buffered)
                + 2 * Kp * tn * in_b       # weight tiles (double-buffered)
                + 2 * tn * 4               # bias tiles
                + 2 * tm_ * Vp * out_b     # resident output block (x2 bufs)
                + 4 * tm_ * 4)             # m / l scratch

    # Shrink the row tile until the footprint fits; floor 128 keeps the MXU
    # reasonably filled (bf16 packs 16 rows per sublane group).
    tm_floor = min(128, tm)
    while tm > tm_floor and vmem_estimate(tm) > vmem_budget_bytes:
        tm = max(tm_floor, _round_up(tm // 2, 16))
    # Last resort (extreme vocab): keep shrinking rather than over-subscribing
    # physical VMEM; a two-pass vocab-outer kernel would be better here.
    while tm > 16 and vmem_estimate(tm) > vmem_budget_bytes:
        tm = max(16, _round_up(tm // 2, 16))
    Mp = _round_up(M, tm)

    # --- pad + cast operands (no-ops skipped; cache these in real use) ------
    x2 = x.reshape(M, hidden)
    if Mp != M or Kp != hidden:
        x2 = jnp.pad(x2, ((0, Mp - M), (0, Kp - hidden)))
    x2 = x2.astype(compute_dtype)

    w2 = w_t
    if Kp != hidden or Vp != vocab:
        w2 = jnp.pad(w2, ((0, Kp - hidden), (0, Vp - vocab)))
    w2 = w2.astype(compute_dtype)

    b2 = b.astype(jnp.float32)
    if Vp != vocab:
        # Padded vocab columns get a huge negative bias -> zero softmax mass.
        b2 = jnp.pad(b2, (0, Vp - vocab), constant_values=_NEG_LARGE)
    b2 = b2.reshape(1, Vp)

    vmem_limit = int(min(max(vmem_estimate(tm) + 8 * _MIB, 32 * _MIB),
                         vmem_cap - 8 * _MIB))

    use_mxu_rowsum = Kp <= 256

    out = pl.pallas_call(
        _make_mlm_kernel(num_v, tn, use_mxu_rowsum),
        out_shape=jax.ShapeDtypeStruct((Mp, Vp), out_dtype),
        grid_spec=pltpu.PrefetchScalarGridSpec(
            num_scalar_prefetch=0,
            grid=(Mp // tm, num_v),
            in_specs=[
                pl.BlockSpec((tm, Kp), lambda i, j: (i, 0)),   # activations
                pl.BlockSpec((Kp, tn), lambda i, j: (0, j)),   # weight tile
                pl.BlockSpec((1, tn), lambda i, j: (0, j)),    # bias tile
            ],
            out_specs=pl.BlockSpec((tm, Vp), lambda i, j: (i, 0)),
            scratch_shapes=[
                pltpu.VMEM((tm, 1), jnp.float32),   # running max
                pltpu.VMEM((tm, 1), jnp.float32),   # running sum-of-exp
            ],
        ),
        compiler_params=pltpu.CompilerParams(
            dimension_semantics=("parallel", "arbitrary"),
            vmem_limit_bytes=vmem_limit,
        ),
    )(x2, w2, b2)

    if Mp != M or Vp != vocab:
        out = out[:M, :vocab]
    return out.reshape(batch, seq, vocab)


if __name__ == "__main__":
    # Small shapes consistent with the module's forward:
    #   x: (batch, seq, hidden) -> out: (batch, seq, vocab_size)
    batch, seq, hidden, vocab_size = 2, 8, 32, 128

    key = jax.random.PRNGKey(0)
    kx, kw, kb = jax.random.split(key, 3)

    x = jax.random.normal(kx, (batch, seq, hidden), dtype=jnp.float32)

    # nn.Linear(hidden, vocab_size): weight (vocab, hidden), xavier_normal_
    # with gain=1.414 -> std = gain * sqrt(2 / (fan_in + fan_out)).
    gain = 1.414
    std = gain * (2.0 / (hidden + vocab_size)) ** 0.5
    weight = std * jax.random.normal(kw, (vocab_size, hidden), dtype=jnp.float32)
    # nn.Linear default bias init: U(-1/sqrt(hidden), 1/sqrt(hidden)).
    bound = 1.0 / (hidden ** 0.5)
    bias = jax.random.uniform(
        kb, (vocab_size,), dtype=jnp.float32, minval=-bound, maxval=bound
    )

    w_t = weight.T  # (hidden, vocab)

    out = masked_language_model(x, w_t, bias)
    out = jax.block_until_ready(out)

    # Pure-JAX reference with the same bf16 operand cast / f32 accumulation.
    xr = x.reshape(-1, hidden).astype(jnp.bfloat16)
    wr = w_t.astype(jnp.bfloat16)
    logits_ref = jnp.dot(xr, wr, preferred_element_type=jnp.float32) + bias
    ref = jax.nn.log_softmax(logits_ref, axis=-1).reshape(
        batch, seq, vocab_size).astype(out.dtype)

    assert out.shape == (batch, seq, vocab_size)
    assert jnp.allclose(out, ref, atol=1e-3, rtol=1e-3), "mismatch vs reference"

    print("KERNEL_OK")
</pallas_src>

<mosaic_0001>
module attributes {stable_mosaic.version = 11 : i64} {
  func.func @kernel(%arg0: i32, %arg1: i32, %arg2: memref<16x128xbf16, #tpu.memory_space<vmem>>, %arg3: memref<128x128xbf16, #tpu.memory_space<vmem>>, %arg4: memref<1x128xf32, #tpu.memory_space<vmem>>, %arg5: memref<16x128xf32, #tpu.memory_space<vmem>>, %arg6: memref<16x1xf32, #tpu.memory_space<vmem>>, %arg7: memref<16x1xf32, #tpu.memory_space<vmem>>) attributes {dimension_semantics = [#tpu.dimension_semantics<parallel>, #tpu.dimension_semantics<arbitrary>], iteration_bounds = array<i64: 1, 1>, scalar_prefetch = 0 : i64, scratch_operands = 2 : i64, tpu.core_type = #tpu.core_type<tc>, window_params = [{transform_indices = @transform_0, window_bounds = array<i64: 16, 128>}, {transform_indices = @transform_1, window_bounds = array<i64: 128, 128>}, {transform_indices = @transform_2, window_bounds = array<i64: 1, 128>}, {transform_indices = @transform_3, window_bounds = array<i64: 16, 128>}]} {
    %c0_i32 = arith.constant 0 : i32
    %0 = arith.cmpi eq, %arg1, %c0_i32 : i32
    %1 = arith.extui %0 : i1 to i32
    %c0_i32_0 = arith.constant 0 : i32
    %2 = arith.cmpi ne, %1, %c0_i32_0 : i32
    scf.if %2 {
      %cst_20 = arith.constant -1.000000e+30 : f32
      %33 = vector.broadcast %cst_20 : f32 to vector<16x1xf32>
      %c0_21 = arith.constant 0 : index
      %c0_22 = arith.constant 0 : index
      %34 = vector.load %arg6[%c0_21, %c0_22] : memref<16x1xf32, #tpu.memory_space<vmem>>, vector<16x1xf32>
      tpu.vector_store %arg6[%c0_21, %c0_22], %33 {strides = array<i32>} : memref<16x1xf32, #tpu.memory_space<vmem>>, vector<16x1xf32>,
      %cst_23 = arith.constant 0.000000e+00 : f32
      %35 = vector.broadcast %cst_23 : f32 to vector<16x1xf32>
      %c0_24 = arith.constant 0 : index
      %c0_25 = arith.constant 0 : index
      %36 = vector.load %arg7[%c0_24, %c0_25] : memref<16x1xf32, #tpu.memory_space<vmem>>, vector<16x1xf32>
      tpu.vector_store %arg7[%c0_24, %c0_25], %35 {strides = array<i32>} : memref<16x1xf32, #tpu.memory_space<vmem>>, vector<16x1xf32>,
    } else {
    }
    %c0 = arith.constant 0 : index
    %c0_1 = arith.constant 0 : index
    %3 = vector.load %arg2[%c0, %c0_1] : memref<16x128xbf16, #tpu.memory_space<vmem>>, vector<16x128xbf16>
    %c0_2 = arith.constant 0 : index
    %c0_3 = arith.constant 0 : index
    %4 = vector.load %arg3[%c0_2, %c0_3] : memref<128x128xbf16, #tpu.memory_space<vmem>>, vector<128x128xbf16>
    %cst = arith.constant dense<0.000000e+00> : vector<16x128xf32>
    %5 = tpu.matmul %3, %4, %cst {dimension_numbers = #tpu.dot_dimension_numbers<[1], [0], [0], [1], [0, 0, 1, 1], [], []>} : vector<16x128xbf16>, vector<128x128xbf16>, vector<16x128xf32> -> vector<16x128xf32>
    %c0_4 = arith.constant 0 : index
    %c0_5 = arith.constant 0 : index
    %6 = vector.load %arg4[%c0_4, %c0_5] : memref<1x128xf32, #tpu.memory_space<vmem>>, vector<1x128xf32>
    %7 = vector.broadcast %6 : vector<1x128xf32> to vector<16x128xf32>
    %8 = arith.addf %5, %7 : vector<16x128xf32>
    %c128_i32 = arith.constant 128 : i32
    %9 = arith.muli %arg1, %c128_i32 : i32
    %10 = tpu.assume_multiple %9, 128 : i32
    %c0_6 = arith.constant 0 : index
    %11 = arith.index_cast %10 : i32 to index
    %12 = vector.load %arg5[%c0_6, %11] : memref<16x128xf32, #tpu.memory_space<vmem>>, vector<16x128xf32>
    tpu.vector_store %arg5[%c0_6, %11], %8 {strides = array<i32>} : memref<16x128xf32, #tpu.memory_space<vmem>>, vector<16x128xf32>,
    %c0_7 = arith.constant 0 : index
    %c0_8 = arith.constant 0 : index
    %13 = vector.load %arg6[%c0_7, %c0_8] : memref<16x1xf32, #tpu.memory_space<vmem>>, vector<16x1xf32>
    %cst_9 = arith.constant dense<0xFF800000> : vector<16xf32>
    %14 = vector.multi_reduction <maximumf>, %8, %cst_9 [1] : vector<16x128xf32> to vector<16xf32>
    %15 = vector.shape_cast %14 : vector<16xf32> to vector<16x1xf32>
    %16 = arith.maximumf %13, %15 : vector<16x1xf32>
    %17 = vector.broadcast %16 : vector<16x1xf32> to vector<16x128xf32>
    %18 = arith.subf %8, %17 : vector<16x128xf32>
    %19 = math.exp %18 : vector<16x128xf32>
    %cst_10 = arith.constant 1.000000e+00 : f32
    %20 = vector.broadcast %cst_10 : f32 to vector<128x128xf32>
    %cst_11 = arith.constant dense<0.000000e+00> : vector<16x128xf32>
    %21 = tpu.matmul %19, %20, %cst_11 {dimension_numbers = #tpu.dot_dimension_numbers<[1], [0], [0], [1], [0, 0, 1, 1], [], []>} : vector<16x128xf32>, vector<128x128xf32>, vector<16x128xf32> -> vector<16x128xf32>
    %22 = vector.extract_strided_slice %21 {offsets = [0, 0], sizes = [16, 1], strides = [1, 1]} : vector<16x128xf32> to vector<16x1xf32>
    %c0_12 = arith.constant 0 : index
    %c0_13 = arith.constant 0 : index
    %23 = vector.load %arg7[%c0_12, %c0_13] : memref<16x1xf32, #tpu.memory_space<vmem>>, vector<16x1xf32>
    %24 = arith.subf %13, %16 : vector<16x1xf32>
    %25 = math.exp %24 : vector<16x1xf32>
    %26 = arith.mulf %23, %25 : vector<16x1xf32>
    %27 = arith.addf %26, %22 : vector<16x1xf32>
    %c0_14 = arith.constant 0 : index
    %c0_15 = arith.constant 0 : index
    %28 = vector.load %arg7[%c0_14, %c0_15] : memref<16x1xf32, #tpu.memory_space<vmem>>, vector<16x1xf32>
    tpu.vector_store %arg7[%c0_14, %c0_15], %27 {strides = array<i32>} : memref<16x1xf32, #tpu.memory_space<vmem>>, vector<16x1xf32>,
    %c0_16 = arith.constant 0 : index
    %c0_17 = arith.constant 0 : index
    %29 = vector.load %arg6[%c0_16, %c0_17] : memref<16x1xf32, #tpu.memory_space<vmem>>, vector<16x1xf32>
    tpu.vector_store %arg6[%c0_16, %c0_17], %16 {strides = array<i32>} : memref<16x1xf32, #tpu.memory_space<vmem>>, vector<16x1xf32>,
    %c0_i32_18 = arith.constant 0 : i32
    %30 = arith.cmpi eq, %arg1, %c0_i32_18 : i32
    %31 = arith.extui %30 : i1 to i32
    %c0_i32_19 = arith.constant 0 : i32
    %32 = arith.cmpi ne, %31, %c0_i32_19 : i32
    scf.if %32 {
      %c0_20 = arith.constant 0 : index
      %c0_21 = arith.constant 0 : index
      %33 = vector.load %arg6[%c0_20, %c0_21] : memref<16x1xf32, #tpu.memory_space<vmem>>, vector<16x1xf32>
      %c0_22 = arith.constant 0 : index
      %c0_23 = arith.constant 0 : index
      %34 = vector.load %arg7[%c0_22, %c0_23] : memref<16x1xf32, #tpu.memory_space<vmem>>, vector<16x1xf32>
      %35 = math.log %34 : vector<16x1xf32>
      %36 = arith.addf %33, %35 : vector<16x1xf32>
      %c0_24 = arith.constant 0 : index
      %c0_25 = arith.constant 0 : index
      %37 = vector.load %arg5[%c0_24, %c0_25] : memref<16x128xf32, #tpu.memory_space<vmem>>, vector<16x128xf32>
      %38 = vector.broadcast %36 : vector<16x1xf32> to vector<16x128xf32>
      %39 = arith.subf %37, %38 : vector<16x128xf32>
      %c0_26 = arith.constant 0 : index
      %c0_27 = arith.constant 0 : index
      %40 = vector.load %arg5[%c0_26, %c0_27] : memref<16x128xf32, #tpu.memory_space<vmem>>, vector<16x128xf32>
      tpu.vector_store %arg5[%c0_26, %c0_27], %39 {strides = array<i32>} : memref<16x128xf32, #tpu.memory_space<vmem>>, vector<16x128xf32>,
    } else {
    }
    return
  }
  func.func @transform_0(%arg0: i32, %arg1: i32) -> (i32, i32) {
    %c0_i32 = arith.constant 0 : i32
    %c0_i32_0 = arith.constant 0 : i32
    return %arg0, %c0_i32 : i32, i32
  }
  func.func @transform_1(%arg0: i32, %arg1: i32) -> (i32, i32) {
    %c0_i32 = arith.constant 0 : i32
    %c0_i32_0 = arith.constant 0 : i32
    return %c0_i32, %arg1 : i32, i32
  }
  func.func @transform_2(%arg0: i32, %arg1: i32) -> (i32, i32) {
    %c0_i32 = arith.constant 0 : i32
    %c0_i32_0 = arith.constant 0 : i32
    return %c0_i32, %arg1 : i32, i32
  }
  func.func @transform_3(%arg0: i32, %arg1: i32) -> (i32, i32) {
    %c0_i32 = arith.constant 0 : i32
    %c0_i32_0 = arith.constant 0 : i32
    return %arg0, %c0_i32 : i32, i32
  }
}

</mosaic_0001>

<llo_original>
// kernel: tpu_custom_call.1
$region0: #{tpu_custom_call.1}
  #allocation0 [shape = 'u32[]', space=smem, size = 0x4, offset = 0x4, fixed_abs, tag = 'smem constant byte address 0x4 - core index']
  #allocation1 [shape = 'u32[144,128]{1,0:T(1,128)}', space=vmem, size = 0x12000, scoped, tag = 'internal scratch']
  #allocation2 [shape = 'f32[16,1]{1,0:T(8,128)}', space=vmem, size = 0x2000, scoped, tag = 'scratch operand']
  #allocation3 [shape = 'f32[16,1]{1,0:T(8,128)}', space=vmem, size = 0x2000, scoped, tag = 'scratch operand']
  %s0 = inlined_call_operand.hbm [shape: bf16[16,128], index: 0, kind: input, shape index: {}]
  %s1 = inlined_call_operand.hbm [shape: bf16[128,128], index: 1, kind: input, shape index: {}]
  %s2 = inlined_call_operand.vmem [shape: f32[1,128], index: 2, kind: input, shape index: {}]
  %s3 = inlined_call_operand.hbm [shape: f32[16,128], index: 3, kind: output, shape index: {}]
  %s4 = sld [smem:[#allocation0]]
  $region38: #{tpu_custom_call.1} parent=0
    _
  %s6 = ssub.s32 1, %s4
  %s7 = scalar_select 0, %s6, %s4
  $region1: #{tpu_custom_call.1} parent=0
    #allocation4 [shape = 'u8[4096]{0}', space=vmem, size = 0x1000, scoped, tag = 'input window, operand 0, single buffered']
    #allocation5 [shape = 's32[1]{0}', space=sflag, size = 0x4, scoped, tag = 'scoped memory for tpu_custom_call.1']
    #allocation6 [shape = 's32[1]{0}', space=sflag, size = 0x4, scoped, tag = 'scoped memory for tpu_custom_call.1']
    #allocation7 [shape = 'u8[32768]{0}', space=vmem, size = 0x8000, scoped, tag = 'input window, operand 1, single buffered']
    #allocation8 [shape = 's32[1]{0}', space=sflag, size = 0x4, scoped, tag = 'scoped memory for tpu_custom_call.1']
    #allocation9 [shape = 'u8[8192]{0}', space=vmem, size = 0x2000, scoped, tag = 'output window, operand 0, single buffered']
    %8 = vsyncpa [#allocation5], 0
    %9 = vsyncpa [#allocation8], 0
    %10 = vsyncpa [#allocation6], 0
    // Predicated region
    $region2: #{tpu_custom_call.1} parent=1 // pred_check
      _
    $region3: #{tpu_custom_call.1} parent=1 // pred_check_branch
      %12 = sbr.rel (0) target = $region5
    $region4: #{tpu_custom_call.1} parent=1 // pred_region
      %s14 = ssub.s32 128, 128
      %15 = vsyncadd [#allocation5], %s14
      %s16 = sshll.u32 [#allocation4], 4
      %s17 = int_to_ptr.vmem [resolvable:$true] %s16
      %22 = dma.hbm_to_vmem [thread:$0]  %s0, 128, %s17, [#allocation5], 64, 64, 4
    $region5: #{tpu_custom_call.1} parent=1 // pred_fallthru
      _
    // Predicated region
    $region6: #{tpu_custom_call.1} parent=1 // pred_check
      _
    $region7: #{tpu_custom_call.1} parent=1 // pred_check_branch
      %24 = sbr.rel (0) target = $region9
    $region8: #{tpu_custom_call.1} parent=1 // pred_region
      %s26 = ssub.s32 1024, 1024
      %27 = vsyncadd [#allocation8], %s26
      %s28 = sshll.u32 [#allocation7], 4
      %s29 = int_to_ptr.vmem [resolvable:$true] %s28
      %34 = dma.hbm_to_vmem [thread:$0]  %s1, 1024, %s29, [#allocation8], 64, 64, 4
    $region9: #{tpu_custom_call.1} parent=1 // pred_fallthru
      _
    // Predicated region
    $region10: #{tpu_custom_call.1} parent=1 // pred_check
      _
    $region11: #{tpu_custom_call.1} parent=1 // pred_check_branch
      %36 = sbr.rel (0) target = $region13
    $region12: #{tpu_custom_call.1} parent=1 // pred_region
      _
    $region13: #{tpu_custom_call.1} parent=1 // pred_fallthru
      _
    // Predicated region
    $region14: #{tpu_custom_call.1} parent=1 // pred_check
      _
    $region15: #{tpu_custom_call.1} parent=1 // pred_check_branch
      %38 = sbr.rel (0) target = $region17
    $region16: #{tpu_custom_call.1} parent=1 // pred_region
      %39 = dma.done [#allocation5], 128
    $region17: #{tpu_custom_call.1} parent=1 // pred_fallthru
      _
    // Predicated region
    $region18: #{tpu_custom_call.1} parent=1 // pred_check
      _
    $region19: #{tpu_custom_call.1} parent=1 // pred_check_branch
      %41 = sbr.rel (0) target = $region21
    $region20: #{tpu_custom_call.1} parent=1 // pred_region
      %42 = dma.done [#allocation8], 1024
    $region21: #{tpu_custom_call.1} parent=1 // pred_fallthru
      _
    %p44 = scmp.eq.s32.totalorder 0, 0
    // Predicated region
    $region22: #{tpu_custom_call.1} parent=1 // pred_check
      %p45 = pneg %p44
    $region23: #{tpu_custom_call.1} parent=1 // pred_check_branch
      %47 = sbr.rel (%p45) target = $region25
    $region24: #{tpu_custom_call.1} parent=1 // pred_region
      %vm48 = vcmask 7168
      %49 = vst.msk [vmem:[#allocation2] sm:$0xff] %vm48, -1e+30
      %50 = vst.msk [vmem:[#allocation2 + $0x8] sm:$0xff] %vm48, -1e+30
      %51 = vst.msk [vmem:[#allocation3] sm:$0xff] %vm48, 0.0
      %52 = vst.msk [vmem:[#allocation3 + $0x8] sm:$0xff] %vm48, 0.0
    $region25: #{tpu_custom_call.1} parent=1 // pred_fallthru
      _
    %v53 = vld [vmem:[#allocation4] sm:$0xf]
    %v54 = vld [vmem:[#allocation4 + $0x4] sm:$0xf]
    %v55 = vld [vmem:[#allocation7] sm:$0xf]
    %v56 = vld [vmem:[#allocation7 + $0x4] sm:$0xf]
    %v57 = vld [vmem:[#allocation7 + $0x8] sm:$0xf]
    %v58 = vld [vmem:[#allocation7 + $0xc] sm:$0xf]
    %v59 = vld [vmem:[#allocation7 + $0x10] sm:$0xf]
    %v60 = vld [vmem:[#allocation7 + $0x14] sm:$0xf]
    %v61 = vld [vmem:[#allocation7 + $0x18] sm:$0xf]
    %v62 = vld [vmem:[#allocation7 + $0x1c] sm:$0xf]
    %v63 = vld [vmem:[#allocation7 + $0x20] sm:$0xf]
    %v64 = vld [vmem:[#allocation7 + $0x24] sm:$0xf]
    %v65 = vld [vmem:[#allocation7 + $0x28] sm:$0xf]
    %v66 = vld [vmem:[#allocation7 + $0x2c] sm:$0xf]
    %v67 = vld [vmem:[#allocation7 + $0x30] sm:$0xf]
    %v68 = vld [vmem:[#allocation7 + $0x34] sm:$0xf]
    %v69 = vld [vmem:[#allocation7 + $0x38] sm:$0xf]
    %v70 = vld [vmem:[#allocation7 + $0x3c] sm:$0xf]
    %v71 = vld [vmem:[%s2] sm:$0x1]
    %v73 = vlaneseq
    %v74 = vshrl.u32 %v73, 7
    %v75 = vsub.s32 0, %v74
    %v76 = vrot.slane %v71, %v75
    %v80 = vunpack.c.l.b16 %v53
    %v81 = vunpack.c.l.b16 %v54
    %v82 = vpack.c.b16 %v81, %v80
    %v100 = vunpack.c.l.b16 %v55
    %v101 = vunpack.c.l.b16 %v56
    %v102 = vunpack.c.l.b16 %v57
    %v103 = vunpack.c.l.b16 %v58
    %v104 = vunpack.c.l.b16 %v59
    %v105 = vunpack.c.l.b16 %v60
    %v106 = vunpack.c.l.b16 %v61
    %v107 = vunpack.c.l.b16 %v62
    %v108 = vunpack.c.l.b16 %v63
    %v109 = vunpack.c.l.b16 %v64
    %v110 = vunpack.c.l.b16 %v65
    %v111 = vunpack.c.l.b16 %v66
    %v112 = vunpack.c.l.b16 %v67
    %v113 = vunpack.c.l.b16 %v68
    %v114 = vunpack.c.l.b16 %v69
    %v115 = vunpack.c.l.b16 %v70
    %v116 = vpack.c.b16 %v101, %v100
    %v117 = vpack.c.b16 %v103, %v102
    %v118 = vpack.c.b16 %v105, %v104
    %v119 = vpack.c.b16 %v107, %v106
    %v120 = vpack.c.b16 %v109, %v108
    %v121 = vpack.c.b16 %v111, %v110
    %v122 = vpack.c.b16 %v113, %v112
    %v123 = vpack.c.b16 %v115, %v114
    %132 = vmatprep.subr.bf16.mxu0 0
    %133 = vmatpush1.bf16.msra.mxu0 %v116
    %134 = vmatprep.subr.bf16.mxu0 0
    %135 = vmatpush1.bf16.msra.mxu0 %v117
    %136 = vmatprep.subr.bf16.mxu0 0
    %137 = vmatpush1.bf16.msra.mxu0 %v118
    %138 = vmatprep.subr.bf16.mxu0 0
    %139 = vmatpush1.bf16.msra.mxu0 %v119
    %140 = vmatprep.subr.bf16.mxu0 0
    %141 = vmatpush1.bf16.msra.mxu0 %v120
    %142 = vmatprep.subr.bf16.mxu0 0
    %143 = vmatpush1.bf16.msra.mxu0 %v121
    %144 = vmatprep.subr.bf16.mxu0 0
    %145 = vmatpush1.bf16.msra.mxu0 %v122
    %146 = vmatprep.subr.bf16.mxu0 0
    %147 = vmatpush1.bf16.msra.mxu0 %v123
    %148 = vmatprep.subr.bf16.mxu0 0
    %149 = vmatpush1.bf16.msra.mxu0 0
    %150 = vmatprep.subr.bf16.mxu0 0
    %151 = vmatpush1.bf16.msra.mxu0 0
    %152 = vmatprep.subr.bf16.mxu0 0
    %153 = vmatpush1.bf16.msra.mxu0 0
    %154 = vmatprep.subr.bf16.mxu0 0
    %155 = vmatpush1.bf16.msra.mxu0 0
    %156 = vmatprep.subr.bf16.mxu0 0
    %157 = vmatpush1.bf16.msra.mxu0 0
    %158 = vmatprep.subr.bf16.mxu0 0
    %159 = vmatpush1.bf16.msra.mxu0 0
    %160 = vmatprep.subr.bf16.mxu0 0
    %161 = vmatpush1.bf16.msra.mxu0 0
    %162 = vmatprep.subr.bf16.mxu0 0
    %163 = vmatpush1.bf16.msra.mxu0 0
    %164 = vmatprep.mubr.bf16.mxu0 0
    %165 = vmatmul.mubr.bf16.gmra.mrb[0].mxu0 %v82
    %v166 = vpop.f32.mrb[0].mxu0
    %v167 = vadd.f32 %v76, %v166
    %v168 = vpop.f32.mrb[0].mxu0
    %v169 = vpop.f32.mrb[0].mxu0
    %v170 = vadd.f32 %v76, %v169
    %v171 = vpop.f32.mrb[0].mxu0
    %172 = vdwg.mxu0
    %s173 = smul.u32 0, 128
    %s174 = sshra.s32 %s173, 7
    %s175 = sand.u32 %s173, 127
    %s176 = scalar_lea.vmem [#allocation9], %s174
    %177 = vst [vmem:[%s176] sm:$0xff] %v167
    %178 = vst [vmem:[%s176 + $0x8] sm:$0xff] %v170
    %v179 = vld [vmem:[#allocation2] sm:$0xff]
    %v180 = vld [vmem:[#allocation2 + $0x8] sm:$0xff]
    %181 = vmax.xlane.f32.xlu0 %v167
    %v182 = vpop.xlane.xlu0 %181
    %183 = vmax.xlane.f32.xlu0 %v170
    %v184 = vpop.xlane.xlu0 %183
    %v185 = vmax.f32 %v179, %v182
    %v186 = vmax.f32 %v180, %v184
    %188 = vset.pattern.permute.xlu0 0
    %189 = vperm.xlu0 %188, %v185
    %v190 = vpop.permute.xlu0 %189
    %193 = vset.pattern.permute.xlu0 0
    %194 = vperm.xlu0 %193, %v186
    %v195 = vpop.permute.xlu0 %194
    %v197 = vsub.f32 %v167, %v190
    %v198 = vsub.f32 %v170, %v195
    %v199 = vmul.f32 %v197, 1.442695
    %v200 = vpow.pop %v199
    %v201 = vmul.f32 %v198, 1.442695
    %v202 = vpow.pop %v201
    %203 = vmatprep.subr.mxu0 0.0
    %204 = vmatpush1.msra.mxu0 1.0
    %205 = vmatprep.subr.mxu0 0.0
    %206 = vmatpush1.msra.mxu0 1.0
    %207 = vmatprep.subr.mxu0 0.0
    %208 = vmatpush1.msra.mxu0 1.0
    %209 = vmatprep.subr.mxu0 0.0
    %210 = vmatpush1.msra.mxu0 1.0
    %211 = vmatprep.subr.mxu0 0.0
    %212 = vmatpush1.msra.mxu0 1.0
    %213 = vmatprep.subr.mxu0 0.0
    %214 = vmatpush1.msra.mxu0 1.0
    %215 = vmatprep.subr.mxu0 0.0
    %216 = vmatpush1.msra.mxu0 1.0
    %217 = vmatprep.subr.mxu0 0.0
    %218 = vmatpush1.msra.mxu0 1.0
    %219 = vmatprep.subr.mxu0 0.0
    %220 = vmatpush1.msra.mxu0 1.0
    %221 = vmatprep.subr.mxu0 0.0
    %222 = vmatpush1.msra.mxu0 1.0
    %223 = vmatprep.subr.mxu0 0.0
    %224 = vmatpush1.msra.mxu0 1.0
    %225 = vmatprep.subr.mxu0 0.0
    %226 = vmatpush1.msra.mxu0 1.0
    %227 = vmatprep.subr.mxu0 0.0
    %228 = vmatpush1.msra.mxu0 1.0
    %229 = vmatprep.subr.mxu0 0.0
    %230 = vmatpush1.msra.mxu0 1.0
    %231 = vmatprep.subr.mxu0 0.0
    %232 = vmatpush1.msra.mxu0 1.0
    %233 = vmatprep.subr.mxu0 0.0
    %234 = vmatpush1.msra.mxu0 1.0
    %235 = vmatprep.subr.mxu0 0.0
    %236 = vmatpush1.msra.mxu0 0.0
    %237 = vmatprep.subr.mxu0 0.0
    %238 = vmatpush1.msra.mxu0 0.0
    %239 = vmatprep.subr.mxu0 0.0
    %240 = vmatpush1.msra.mxu0 0.0
    %241 = vmatprep.subr.mxu0 0.0
    %242 = vmatpush1.msra.mxu0 0.0
    %243 = vmatprep.subr.mxu0 0.0
    %244 = vmatpush1.msra.mxu0 0.0
    %245 = vmatprep.subr.mxu0 0.0
    %246 = vmatpush1.msra.mxu0 0.0
    %247 = vmatprep.subr.mxu0 0.0
    %248 = vmatpush1.msra.mxu0 0.0
    %249 = vmatprep.subr.mxu0 0.0
    %250 = vmatpush1.msra.mxu0 0.0
    %251 = vmatprep.subr.mxu0 0.0
    %252 = vmatpush1.msra.mxu0 0.0
    %253 = vmatprep.subr.mxu0 0.0
    %254 = vmatpush1.msra.mxu0 0.0
    %255 = vmatprep.subr.mxu0 0.0
    %256 = vmatpush1.msra.mxu0 0.0
    %257 = vmatprep.subr.mxu0 0.0
    %258 = vmatpush1.msra.mxu0 0.0
    %259 = vmatprep.subr.mxu0 0.0
    %260 = vmatpush1.msra.mxu0 0.0
    %261 = vmatprep.subr.mxu0 0.0
    %262 = vmatpush1.msra.mxu0 0.0
    %263 = vmatprep.subr.mxu0 0.0
    %264 = vmatpush1.msra.mxu0 0.0
    %265 = vmatprep.subr.mxu0 0.0
    %266 = vmatpush1.msra.mxu0 0.0
    %267 = vmatprep.mubr.f32.mxu0 0.0
    %268 = vmatmul.mubr.f32.gmra.mrb[0].mxu0 %v200
    %v269 = vpop.f32.mrb[0].mxu0
    %v270 = vadd.f32 0.0, %v269
    %v271 = vpop.f32.mrb[0].mxu0
    %272 = vmatprep.mubr.f32.mxu0 0.0
    %273 = vmatmul.mubr.f32.gmra.mrb[0].mxu0 %v202
    %v274 = vpop.f32.mrb[0].mxu0
    %v275 = vadd.f32 0.0, %v274
    %v276 = vpop.f32.mrb[0].mxu0
    %277 = vdwg.mxu0
    %v278 = vld [vmem:[#allocation3] sm:$0xff]
    %v279 = vld [vmem:[#allocation3 + $0x8] sm:$0xff]
    %v280 = vsub.f32 %v179, %v185
    %v281 = vsub.f32 %v180, %v186
    %v282 = vmul.f32 %v280, 1.442695
    %v283 = vpow.pop %v282
    %v284 = vmul.f32 %v281, 1.442695
    %v285 = vpow.pop %v284
    %v286 = vmul.f32 %v278, %v283
    %v287 = vmul.f32 %v279, %v285
    %v288 = vadd.f32 %v286, %v270
    %v289 = vadd.f32 %v287, %v275
    %vm290 = vcmask 7168
    %291 = vst.msk [vmem:[#allocation3] sm:$0xff] %vm290, %v288
    %292 = vst.msk [vmem:[#allocation3 + $0x8] sm:$0xff] %vm290, %v289
    %293 = vst.msk [vmem:[#allocation2] sm:$0xff] %vm290, %v185
    %294 = vst.msk [vmem:[#allocation2 + $0x8] sm:$0xff] %vm290, %v186
    // Predicated region
    $region26: #{tpu_custom_call.1} parent=1 // pred_check
      %p295 = pneg %p44
    $region27: #{tpu_custom_call.1} parent=1 // pred_check_branch
      %297 = sbr.rel (%p295) target = $region29
    $region28: #{tpu_custom_call.1} parent=1 // pred_region
      %v298 = vld [vmem:[#allocation2] sm:$0xff]
      %v299 = vld [vmem:[#allocation2 + $0x8] sm:$0xff]
      %v300 = vld [vmem:[#allocation3] sm:$0xff]
      %v301 = vld [vmem:[#allocation3 + $0x8] sm:$0xff]
      %v302 = vlog2.pop %v300
      %v303 = vmul.f32 %v302, 0.6931472
      %v304 = vlog2.pop %v301
      %v305 = vmul.f32 %v304, 0.6931472
      %v306 = vadd.f32 %v298, %v303
      %v307 = vadd.f32 %v299, %v305
      %v308 = vld [vmem:[#allocation9] sm:$0xff]
      %v309 = vld [vmem:[#allocation9 + $0x8] sm:$0xff]
      %311 = vset.pattern.permute.xlu0 0
      %312 = vperm.xlu0 %311, %v306
      %v313 = vpop.permute.xlu0 %312
      %316 = vset.pattern.permute.xlu0 0
      %317 = vperm.xlu0 %316, %v307
      %v318 = vpop.permute.xlu0 %317
      %v320 = vsub.f32 %v308, %v313
      %v321 = vsub.f32 %v309, %v318
      %322 = vst [vmem:[#allocation9] sm:$0xff] %v320
      %323 = vst [vmem:[#allocation9 + $0x8] sm:$0xff] %v321
    $region29: #{tpu_custom_call.1} parent=1 // pred_fallthru
      _
    // Predicated region
    $region30: #{tpu_custom_call.1} parent=1 // pred_check
      _
    $region31: #{tpu_custom_call.1} parent=1 // pred_check_branch
      %325 = sbr.rel (0) target = $region33
    $region32: #{tpu_custom_call.1} parent=1 // pred_region
      %s327 = ssub.s32 256, 256
      %328 = vsyncadd [#allocation6], %s327
      %s329 = sshll.u32 [#allocation9], 4
      %s330 = int_to_ptr.vmem [resolvable:$true] %s329
      %335 = dma.vmem_to_hbm [thread:$0]  %s330, 256, %s3, [#allocation6], 128, 128, 8
    $region33: #{tpu_custom_call.1} parent=1 // pred_fallthru
      _
    // Predicated region
    $region34: #{tpu_custom_call.1} parent=1 // pred_check
      _
    $region35: #{tpu_custom_call.1} parent=1 // pred_check_branch
      %337 = sbr.rel (0) target = $region37
    $region36: #{tpu_custom_call.1} parent=1 // pred_region
      %338 = dma.done [#allocation6], 256
    $region37: #{tpu_custom_call.1} parent=1 // pred_fallthru
      _
    %339 = vsyncpa [#allocation5], 1
    %340 = vsyncpa [#allocation8], 1
    %341 = vsyncpa [#allocation6], 1

</llo_original>
